<compile_context>
chip_gen: v7x
topology: tpu7x:2x2x1
jax: 0.10.0
libtpu: 0.0.40
codegen_flags: <defaults>
</compile_context>

<pallas_src>
import functools
from dataclasses import dataclass

import jax
import jax.numpy as jnp
from jax.experimental import pallas as pl
from jax.experimental.pallas import tpu as pltpu


@dataclass(frozen=True)
class MOEConfig:
    n_embd: int = 32
    n_exp: int = 4
    top_k: int = 2
    capacity_factor: float = 1.25
    bias: bool = True
    dropout: float = 0.0          # eval: identity
    use_router_noise: bool = False
    use_router_z_loss: bool = False
    use_aux_loss: bool = False


# Conservative scoped-VMEM target.  32 MiB is the v6e/v7x default scoped limit
# and a safe raise on v5e (128 MiB physical); tiles below are sized against it.
_VMEM_LIMIT_BYTES = 32 * 1024 * 1024


def _round_up(a, m):
    return (a + m - 1) // m * m


def _cdiv(a, b):
    return -(-a // b)


def _expert_capacity(cfg: MOEConfig, B, T):
    # Replicates the python-float arithmetic of the reference implementation.
    exp_cap = cfg.top_k * B * T / cfg.n_exp * cfg.capacity_factor
    exp_cap += exp_cap % 2
    return int(exp_cap)


def _pad_to(a, shape):
    pads = [(0, s - d) for d, s in zip(a.shape, shape)]
    return jnp.pad(a, pads)


def _choose_d_tile(Cp, d_half):
    """Dp (FFN-half) tile: bound double-buffered weight blocks (~12*Cp*d_tile B)."""
    Dp128 = _round_up(d_half, 128)
    d_tile = ((_VMEM_LIMIT_BYTES // 3) // (12 * Cp)) // 128 * 128
    d_tile = max(128, min(Dp128, d_tile))
    Dp = _round_up(Dp128, d_tile)        # zero-padded; padded FFN cols contribute 0
    return d_tile, Dp


def _choose_cap_tile(Cp, exp_cap):
    """Capacity tile: 16-aligned (bf16 sublane packing), row blocks ~12*cap*Cp B."""
    cap_max = max(16, ((_VMEM_LIMIT_BYTES // 3) // (12 * Cp)) // 16 * 16)
    cap_target = min(512, cap_max)       # ~512 rows ≈ 85% of HBM roofline
    n_tiles = max(1, _cdiv(exp_cap, cap_target))
    cap_tile = max(16, _round_up(_cdiv(exp_cap, n_tiles), 16))
    return cap_tile, n_tiles * cap_tile


# -----------------------------------------------------------------------------
# Router (plain JAX glue — top-k / capacity bookkeeping, no heavy compute).
# Index-form output: per (expert, capacity-slot) token index + combine weight.
# -----------------------------------------------------------------------------
def router_forward_indices(x, w_router, cfg: MOEConfig, cap_pad):
    B, T, C = x.shape
    N = B * T
    E, K = cfg.n_exp, cfg.top_k

    # nn.Linear(n_embd, n_exp, bias=False): logits = x @ W.T
    logits = jnp.einsum("btc,ec->bte", x, w_router)                 # (B,T,E)
    topk_logits, topk_idx = jax.lax.top_k(logits, K)                # (B,T,K)

    in_topk = jnp.sum(jax.nn.one_hot(topk_idx, E, dtype=jnp.int32), axis=2) > 0
    probs = jax.nn.softmax(jnp.where(in_topk, logits, -jnp.inf), axis=-1)

    exp_cap = _expert_capacity(cfg, B, T)

    topk_idx_f = topk_idx.reshape(N, K)                             # (N,K)
    exp_mask = jax.nn.one_hot(topk_idx_f, E, dtype=jnp.int32)       # (N,K,E)
    exp_mask = exp_mask.transpose(1, 0, 2)                          # (K,N,E)

    exp_rank_full = jnp.cumsum(exp_mask.reshape(K * N, E), axis=0).reshape(K, N, E) - 1
    keep = exp_mask * (exp_rank_full < exp_cap).astype(jnp.int32)   # (K,N,E)
    used_cap = jnp.sum(keep, axis=(0, 1))                           # (E,)

    rank = jnp.sum(keep * exp_rank_full, axis=-1)                   # (K,N) slot within expert
    valid = jnp.sum(keep, axis=-1)                                  # (K,N) 0/1 kept flag
    e_ch = topk_idx_f.T                                             # (K,N) chosen expert

    probs_flat = probs.reshape(N, E)
    w = jnp.take_along_axis(probs_flat, e_ch.T, axis=1).T           # (K,N) routed prob
    w = w * valid.astype(w.dtype)

    # Scatter (token id, weight) into the (E, cap_pad) slot grid.  Each valid
    # (expert, rank) pair is written by at most one token.  All DROPPED
    # assignments alias the single dump slot at index E*cap_pad; last-writer-
    # wins nondeterminism there is harmless because that slot is discarded —
    # do not reuse it for anything live.
    flat = e_ch * cap_pad + rank
    flat = jnp.where(valid > 0, flat, E * cap_pad).reshape(-1)
    tok_ids = jnp.broadcast_to(jnp.arange(N, dtype=jnp.int32)[None, :], (K, N)).reshape(-1)

    tok_idx = (jnp.zeros((E * cap_pad + 1,), jnp.int32)
               .at[flat].set(tok_ids))[: E * cap_pad].reshape(E, cap_pad)
    slot_w = (jnp.zeros((E * cap_pad + 1,), jnp.float32)
              .at[flat].set(w.reshape(-1).astype(jnp.float32)))[: E * cap_pad].reshape(E, cap_pad)
    return used_cap, tok_idx, slot_w, exp_cap


# -----------------------------------------------------------------------------
# One-time weight preparation (hoisted out of the per-step forward).
# -----------------------------------------------------------------------------
def prepare_expert_weights(params, cfg: MOEConfig):
    C, E = cfg.n_embd, cfg.n_exp
    d_half = (3 * C) // 2
    Cp = _round_up(C, 128)
    _, Dp = _choose_d_tile(Cp, d_half)
    # TODO(synk): on v6e/v7x consider padding Cp/Dp to 256-multiples to fill the
    # 256-tall MXU when real dims allow; kept at 128 here for minimal padding.
    return {
        "wu": _pad_to(params["c_fc"][:, :, :d_half], (E, Cp, Dp)).astype(jnp.bfloat16),
        "wg": _pad_to(params["c_fc"][:, :, d_half:], (E, Cp, Dp)).astype(jnp.bfloat16),
        "bu": _pad_to(params["bias_fc"][:, :, :d_half], (E, 1, Dp)).astype(jnp.float32),
        "bg": _pad_to(params["bias_fc"][:, :, d_half:], (E, 1, Dp)).astype(jnp.float32),
        "wp": _pad_to(params["c_proj"], (E, Dp, Cp)).astype(jnp.bfloat16),
        "bp": _pad_to(params["bias_proj"], (E, 1, Cp)).astype(jnp.float32),
    }


# -----------------------------------------------------------------------------
# Pallas kernel: per-expert SwiGLU MLP on pre-gathered token rows, K-tiled over
# the FFN-half dim (Dp) with an f32 VMEM accumulator.  bf16 MXU operands,
# f32 accumulation, bf16 output store.
# -----------------------------------------------------------------------------
def moe_expert_mlp_kernel(xg_ref,   # (1, cap_t, Cp)     bf16  gathered tokens
                          wu_ref,   # (1, Cp, d_tile)    bf16  c_fc "up" slice
                          wg_ref,   # (1, Cp, d_tile)    bf16  c_fc "gate" slice
                          bu_ref,   # (1, 1, d_tile)     f32
                          bg_ref,   # (1, 1, d_tile)     f32
                          wp_ref,   # (1, d_tile, Cp)    bf16  c_proj slice
                          bp_ref,   # (1, 1, Cp)         f32
                          out_ref,  # (1, cap_t, Cp)     bf16  expert output rows
                          acc_ref): # (cap_t, Cp)        f32   VMEM accumulator
    d = pl.program_id(2)

    @pl.when(d == 0)
    def _init():
        acc_ref[...] = jnp.zeros_like(acc_ref)

    xb = xg_ref[0]                                                   # (cap_t, Cp) bf16
    u = jnp.dot(xb, wu_ref[0], preferred_element_type=jnp.float32) + bu_ref[0]
    g = jnp.dot(xb, wg_ref[0], preferred_element_type=jnp.float32) + bg_ref[0]
    a = (u * jax.nn.sigmoid(u)) * g                                  # SiLU(u)*gate, f32
    acc_ref[...] += jnp.dot(a.astype(jnp.bfloat16), wp_ref[0],
                            preferred_element_type=jnp.float32)

    @pl.when(d == pl.num_programs(2) - 1)
    def _finalize():
        # dropout(p=0.0) in eval mode == identity; bias_proj added once.
        out_ref[0] = (acc_ref[...] + bp_ref[0]).astype(out_ref.dtype)


def moe_pallas(x, w_router, ew, cfg: MOEConfig):
    B, T, C = x.shape
    N = B * T
    E = cfg.n_exp
    d_half = (3 * C) // 2

    Cp = _round_up(C, 128)
    d_tile, Dp = _choose_d_tile(Cp, d_half)
    exp_cap = _expert_capacity(cfg, B, T)
    cap_tile, cap_p = _choose_cap_tile(Cp, exp_cap)
    n_cap_tiles = cap_p // cap_tile
    n_d_tiles = Dp // d_tile

    _, tok_idx, slot_w, _ = router_forward_indices(x, w_router, cfg, cap_p)

    # Gather token rows per (expert, slot): cast to bf16 BEFORE the gather so
    # the materialized (E, cap_p, Cp) intermediate is bf16 end-to-end.
    x_flat = _pad_to(x.reshape(N, C), (N, Cp)).astype(jnp.bfloat16)
    x_gath = x_flat[tok_idx]                                         # (E, cap_p, Cp) bf16
    # TODO(synk): fuse this gather into the kernel via scalar-prefetched tok_idx
    # + per-row HBM DMA to remove the gathered intermediate entirely.

    flops = 6 * E * cap_p * Cp * Dp                                  # 3 matmuls
    bytes_accessed = (E * 3 * Cp * Dp * 2 * n_cap_tiles              # bf16 weights
                      + E * cap_p * Cp * 2 * (n_d_tiles + 1)         # bf16 x (+reread) & out
                      + E * (2 * Dp + Cp) * 4)                       # f32 biases

    kernel = pl.pallas_call(
        moe_expert_mlp_kernel,
        out_shape=jax.ShapeDtypeStruct((E, cap_p, Cp), jnp.bfloat16),
        grid_spec=pltpu.PrefetchScalarGridSpec(
            num_scalar_prefetch=0,
            grid=(E, n_cap_tiles, n_d_tiles),
            in_specs=[
                pl.BlockSpec((1, cap_tile, Cp), lambda e, c, d: (e, c, 0)),  # x_gath
                pl.BlockSpec((1, Cp, d_tile),   lambda e, c, d: (e, 0, d)),  # wu
                pl.BlockSpec((1, Cp, d_tile),   lambda e, c, d: (e, 0, d)),  # wg
                pl.BlockSpec((1, 1, d_tile),    lambda e, c, d: (e, 0, d)),  # bu
                pl.BlockSpec((1, 1, d_tile),    lambda e, c, d: (e, 0, d)),  # bg
                pl.BlockSpec((1, d_tile, Cp),   lambda e, c, d: (e, d, 0)),  # wp
                pl.BlockSpec((1, 1, Cp),        lambda e, c, d: (e, 0, 0)),  # bp
            ],
            out_specs=pl.BlockSpec((1, cap_tile, Cp), lambda e, c, d: (e, c, 0)),
            scratch_shapes=[pltpu.VMEM((cap_tile, Cp), jnp.float32)],
        ),
        compiler_params=pltpu.CompilerParams(
            # Accumulation only along the Dp axis -> expert / capacity axes are
            # parallel (megacore sharding on v7x), Dp axis is arbitrary.
            dimension_semantics=("parallel", "parallel", "arbitrary"),
            vmem_limit_bytes=_VMEM_LIMIT_BYTES,
        ),
        cost_estimate=pl.CostEstimate(
            flops=flops,
            transcendentals=E * cap_p * Dp,
            bytes_accessed=bytes_accessed,
        ),
    )

    expert_out = kernel(x_gath, ew["wu"], ew["wg"], ew["bu"], ew["bg"],
                        ew["wp"], ew["bp"])                          # (E, cap_p, Cp) bf16

    # Combine: apply the routed prob and scatter-add back to tokens, in f32.
    # (Dropped/padded slots have slot_w == 0 and tok_idx == 0 -> contribute 0.)
    weighted = expert_out.astype(jnp.float32) * slot_w[..., None]    # (E, cap_p, Cp) f32
    out_acc = jnp.zeros((N, Cp), jnp.float32).at[tok_idx.reshape(-1)].add(
        weighted.reshape(E * cap_p, Cp))
    return out_acc[:, :C].astype(x.dtype).reshape(B, T, C)


# -----------------------------------------------------------------------------
# Pure-JAX reference: the ORIGINAL dense one-hot dispatch/combine formulation,
# all in f32 (used only for the correctness check at toy sizes).
# -----------------------------------------------------------------------------
def router_forward_dense(x, w_router, cfg: MOEConfig):
    B, T, C = x.shape
    N = B * T
    n_exp, top_k = cfg.n_exp, cfg.top_k

    logits = jnp.einsum("btc,ec->bte", x, w_router)
    topk_logits, topk_idx = jax.lax.top_k(logits, top_k)
    in_topk = jnp.sum(jax.nn.one_hot(topk_idx, n_exp, dtype=jnp.int32), axis=2) > 0
    router_probs = jax.nn.softmax(jnp.where(in_topk, logits, -jnp.inf), axis=-1)

    exp_cap = _expert_capacity(cfg, B, T)

    exp_mask = jax.nn.one_hot(topk_idx, n_exp, dtype=jnp.int32)
    exp_mask = exp_mask.reshape(N, top_k, n_exp).transpose(1, 0, 2)
    exp_rank = exp_mask.reshape(top_k * N, n_exp)
    exp_rank = jnp.cumsum(exp_rank, axis=0) - 1
    exp_rank = exp_rank.reshape(top_k, N, n_exp)

    exp_mask = exp_mask * (exp_rank < exp_cap).astype(jnp.int32)
    used_cap = jnp.sum(exp_mask, axis=(0, 1))
    exp_rank = jnp.sum(exp_mask * exp_rank, axis=-1)

    rp = router_probs.reshape(N, n_exp)[None, :, :]
    exp_weights = exp_mask.astype(x.dtype) * rp
    exp_rank_sc = jax.nn.one_hot(exp_rank, exp_cap, dtype=x.dtype)
    cb_weight = jnp.sum(exp_weights[:, :, :, None] * exp_rank_sc[:, :, None, :], axis=0)
    sec_mask = (cb_weight != 0).astype(x.dtype)
    return used_cap, cb_weight, sec_mask, exp_cap


def moe_reference(x, params, cfg: MOEConfig):
    B, T, C = x.shape
    N = B * T
    _, cb_weight, sec_mask, _ = router_forward_dense(x, params["w_router"], cfg)
    x_flat = x.reshape(N, C)
    exp_batches = jnp.einsum("nec,nd->ecd", sec_mask, x_flat)        # (E,cap,C)
    h = jnp.einsum("ecd,edf->ecf", exp_batches, params["c_fc"]) + params["bias_fc"]
    half = h.shape[-1] // 2
    u, g = h[..., :half], h[..., half:]
    a = (u * jax.nn.sigmoid(u)) * g
    eo = jnp.einsum("ecf,efd->ecd", a, params["c_proj"]) + params["bias_proj"]
    out = cb_weight.reshape(N, -1) @ eo.reshape(-1, C)
    return out.reshape(B, T, C)


# -----------------------------------------------------------------------------
def init_params(key, cfg: MOEConfig):
    C, E = cfg.n_embd, cfg.n_exp
    d_ff = 3 * C
    k = jax.random.split(key, 5)
    return {
        "w_router": 0.5 * jax.random.normal(k[0], (E, C), jnp.float32),
        "c_fc": 0.02 * jax.random.normal(k[1], (E, C, d_ff), jnp.float32),
        "bias_fc": 0.02 * jax.random.normal(k[2], (E, 1, d_ff), jnp.float32),
        "c_proj": 0.02 * jax.random.normal(k[3], (E, d_ff // 2, C), jnp.float32),
        "bias_proj": 0.02 * jax.random.normal(k[4], (E, 1, C), jnp.float32),
    }


if __name__ == "__main__":
    cfg = MOEConfig(n_embd=32, n_exp=4, top_k=2, capacity_factor=1.25, bias=True)
    B, T = 2, 8

    key = jax.random.PRNGKey(0)
    kx, kp = jax.random.split(key)
    x = jax.random.normal(kx, (B, T, cfg.n_embd), jnp.float32)
    params = init_params(kp, cfg)

    # One-time weight preparation (pad + bf16 cast + up/gate split) — hoisted
    # out of the per-forward path per the performance review.
    ew = prepare_expert_weights(params, cfg)

    run = jax.jit(functools.partial(moe_pallas, cfg=cfg))
    out = run(x, params["w_router"], ew)
    out = jax.block_until_ready(out)

    ref = moe_reference(x, params, cfg)                  # full-f32 dense reference
    assert out.shape == (B, T, cfg.n_embd)
    # bf16 MXU operands + bf16 kernel output (f32 accumulation) vs full-f32
    # reference: loose tolerance.
    assert jnp.allclose(out, ref, rtol=2e-2, atol=3e-3), "mismatch vs JAX reference"

    print("KERNEL_OK")
</pallas_src>

<mosaic_0001>
module attributes {stable_mosaic.version = 11 : i64} {
  func.func @moe_expert_mlp_kernel(%arg0: i32, %arg1: i32, %arg2: i32, %arg3: memref<1x16x128xbf16, #tpu.memory_space<vmem>>, %arg4: memref<1x128x128xbf16, #tpu.memory_space<vmem>>, %arg5: memref<1x128x128xbf16, #tpu.memory_space<vmem>>, %arg6: memref<1x1x128xf32, #tpu.memory_space<vmem>>, %arg7: memref<1x1x128xf32, #tpu.memory_space<vmem>>, %arg8: memref<1x128x128xbf16, #tpu.memory_space<vmem>>, %arg9: memref<1x1x128xf32, #tpu.memory_space<vmem>>, %arg10: memref<1x16x128xbf16, #tpu.memory_space<vmem>>, %arg11: memref<16x128xf32, #tpu.memory_space<vmem>>) attributes {dimension_semantics = [#tpu.dimension_semantics<parallel>, #tpu.dimension_semantics<parallel>, #tpu.dimension_semantics<arbitrary>], iteration_bounds = array<i64: 4, 1, 1>, scalar_prefetch = 0 : i64, scratch_operands = 1 : i64, tpu.core_type = #tpu.core_type<tc>, window_params = [{transform_indices = @transform_0, window_bounds = array<i64: 1, 16, 128>}, {transform_indices = @transform_1, window_bounds = array<i64: 1, 128, 128>}, {transform_indices = @transform_2, window_bounds = array<i64: 1, 128, 128>}, {transform_indices = @transform_3, window_bounds = array<i64: 1, 1, 128>}, {transform_indices = @transform_4, window_bounds = array<i64: 1, 1, 128>}, {transform_indices = @transform_5, window_bounds = array<i64: 1, 128, 128>}, {transform_indices = @transform_6, window_bounds = array<i64: 1, 1, 128>}, {transform_indices = @transform_7, window_bounds = array<i64: 1, 16, 128>}]} {
    %c0_i32 = arith.constant 0 : i32
    %0 = arith.cmpi eq, %arg2, %c0_i32 : i32
    %1 = arith.extui %0 : i1 to i32
    %c0_i32_0 = arith.constant 0 : i32
    %2 = arith.cmpi ne, %1, %c0_i32_0 : i32
    scf.if %2 {
      %cst_27 = arith.constant 0.000000e+00 : f32
      %36 = vector.broadcast %cst_27 : f32 to vector<16x128xf32>
      %c0_28 = arith.constant 0 : index
      %c0_29 = arith.constant 0 : index
      %37 = vector.load %arg11[%c0_28, %c0_29] : memref<16x128xf32, #tpu.memory_space<vmem>>, vector<16x128xf32>
      tpu.vector_store %arg11[%c0_28, %c0_29], %36 {strides = array<i32>} : memref<16x128xf32, #tpu.memory_space<vmem>>, vector<16x128xf32>,
    } else {
    }
    %c0 = arith.constant 0 : index
    %c0_1 = arith.constant 0 : index
    %c0_2 = arith.constant 0 : index
    %3 = vector.load %arg3[%c0, %c0_1, %c0_2] : memref<1x16x128xbf16, #tpu.memory_space<vmem>>, vector<1x16x128xbf16>
    %4 = vector.shape_cast %3 : vector<1x16x128xbf16> to vector<16x128xbf16>
    %c0_3 = arith.constant 0 : index
    %c0_4 = arith.constant 0 : index
    %c0_5 = arith.constant 0 : index
    %5 = vector.load %arg4[%c0_3, %c0_4, %c0_5] : memref<1x128x128xbf16, #tpu.memory_space<vmem>>, vector<1x128x128xbf16>
    %6 = vector.shape_cast %5 : vector<1x128x128xbf16> to vector<128x128xbf16>
    %cst = arith.constant dense<0.000000e+00> : vector<16x128xf32>
    %7 = tpu.matmul %4, %6, %cst {dimension_numbers = #tpu.dot_dimension_numbers<[1], [0], [0], [1], [0, 0, 1, 1], [], []>} : vector<16x128xbf16>, vector<128x128xbf16>, vector<16x128xf32> -> vector<16x128xf32>
    %c0_6 = arith.constant 0 : index
    %c0_7 = arith.constant 0 : index
    %c0_8 = arith.constant 0 : index
    %8 = vector.load %arg6[%c0_6, %c0_7, %c0_8] : memref<1x1x128xf32, #tpu.memory_space<vmem>>, vector<1x1x128xf32>
    %9 = vector.shape_cast %8 : vector<1x1x128xf32> to vector<1x128xf32>
    %10 = vector.broadcast %9 : vector<1x128xf32> to vector<16x128xf32>
    %11 = arith.addf %7, %10 : vector<16x128xf32>
    %c0_9 = arith.constant 0 : index
    %c0_10 = arith.constant 0 : index
    %c0_11 = arith.constant 0 : index
    %12 = vector.load %arg5[%c0_9, %c0_10, %c0_11] : memref<1x128x128xbf16, #tpu.memory_space<vmem>>, vector<1x128x128xbf16>
    %13 = vector.shape_cast %12 : vector<1x128x128xbf16> to vector<128x128xbf16>
    %cst_12 = arith.constant dense<0.000000e+00> : vector<16x128xf32>
    %14 = tpu.matmul %4, %13, %cst_12 {dimension_numbers = #tpu.dot_dimension_numbers<[1], [0], [0], [1], [0, 0, 1, 1], [], []>} : vector<16x128xbf16>, vector<128x128xbf16>, vector<16x128xf32> -> vector<16x128xf32>
    %c0_13 = arith.constant 0 : index
    %c0_14 = arith.constant 0 : index
    %c0_15 = arith.constant 0 : index
    %15 = vector.load %arg7[%c0_13, %c0_14, %c0_15] : memref<1x1x128xf32, #tpu.memory_space<vmem>>, vector<1x1x128xf32>
    %16 = vector.shape_cast %15 : vector<1x1x128xf32> to vector<1x128xf32>
    %17 = vector.broadcast %16 : vector<1x128xf32> to vector<16x128xf32>
    %18 = arith.addf %14, %17 : vector<16x128xf32>
    %19 = arith.negf %11 : vector<16x128xf32>
    %20 = math.exp %19 : vector<16x128xf32>
    %cst_16 = arith.constant 1.000000e+00 : f32
    %21 = vector.broadcast %cst_16 : f32 to vector<16x128xf32>
    %22 = arith.addf %21, %20 : vector<16x128xf32>
    %23 = arith.divf %21, %22 : vector<16x128xf32>
    %24 = arith.mulf %11, %23 : vector<16x128xf32>
    %25 = arith.mulf %24, %18 : vector<16x128xf32>
    %c0_17 = arith.constant 0 : index
    %c0_18 = arith.constant 0 : index
    %26 = vector.load %arg11[%c0_17, %c0_18] : memref<16x128xf32, #tpu.memory_space<vmem>>, vector<16x128xf32>
    %27 = arith.truncf %25 : vector<16x128xf32> to vector<16x128xbf16>
    %c0_19 = arith.constant 0 : index
    %c0_20 = arith.constant 0 : index
    %c0_21 = arith.constant 0 : index
    %28 = vector.load %arg8[%c0_19, %c0_20, %c0_21] : memref<1x128x128xbf16, #tpu.memory_space<vmem>>, vector<1x128x128xbf16>
    %29 = vector.shape_cast %28 : vector<1x128x128xbf16> to vector<128x128xbf16>
    %cst_22 = arith.constant dense<0.000000e+00> : vector<16x128xf32>
    %30 = tpu.matmul %27, %29, %cst_22 {dimension_numbers = #tpu.dot_dimension_numbers<[1], [0], [0], [1], [0, 0, 1, 1], [], []>} : vector<16x128xbf16>, vector<128x128xbf16>, vector<16x128xf32> -> vector<16x128xf32>
    %31 = arith.addf %26, %30 : vector<16x128xf32>
    %c0_23 = arith.constant 0 : index
    %c0_24 = arith.constant 0 : index
    %32 = vector.load %arg11[%c0_23, %c0_24] : memref<16x128xf32, #tpu.memory_space<vmem>>, vector<16x128xf32>
    tpu.vector_store %arg11[%c0_23, %c0_24], %31 {strides = array<i32>} : memref<16x128xf32, #tpu.memory_space<vmem>>, vector<16x128xf32>,
    %c0_i32_25 = arith.constant 0 : i32
    %33 = arith.cmpi eq, %arg2, %c0_i32_25 : i32
    %34 = arith.extui %33 : i1 to i32
    %c0_i32_26 = arith.constant 0 : i32
    %35 = arith.cmpi ne, %34, %c0_i32_26 : i32
    scf.if %35 {
      %c0_27 = arith.constant 0 : index
      %c0_28 = arith.constant 0 : index
      %36 = vector.load %arg11[%c0_27, %c0_28] : memref<16x128xf32, #tpu.memory_space<vmem>>, vector<16x128xf32>
      %c0_29 = arith.constant 0 : index
      %c0_30 = arith.constant 0 : index
      %c0_31 = arith.constant 0 : index
      %37 = vector.load %arg9[%c0_29, %c0_30, %c0_31] : memref<1x1x128xf32, #tpu.memory_space<vmem>>, vector<1x1x128xf32>
      %38 = vector.shape_cast %37 : vector<1x1x128xf32> to vector<1x128xf32>
      %39 = vector.broadcast %38 : vector<1x128xf32> to vector<16x128xf32>
      %40 = arith.addf %36, %39 : vector<16x128xf32>
      %41 = arith.truncf %40 : vector<16x128xf32> to vector<16x128xbf16>
      %c0_32 = arith.constant 0 : index
      %c0_33 = arith.constant 0 : index
      %c0_34 = arith.constant 0 : index
      %42 = vector.load %arg10[%c0_32, %c0_33, %c0_34] : memref<1x16x128xbf16, #tpu.memory_space<vmem>>, vector<1x16x128xbf16>
      %43 = vector.shape_cast %42 : vector<1x16x128xbf16> to vector<16x128xbf16>
      %44 = vector.shape_cast %41 : vector<16x128xbf16> to vector<1x16x128xbf16>
      tpu.vector_store %arg10[%c0_32, %c0_33, %c0_34], %44 {strides = array<i32>} : memref<1x16x128xbf16, #tpu.memory_space<vmem>>, vector<1x16x128xbf16>,
    } else {
    }
    return
  }
  func.func @transform_0(%arg0: i32, %arg1: i32, %arg2: i32) -> (i32, i32, i32) {
    %c0_i32 = arith.constant 0 : i32
    %c0_i32_0 = arith.constant 0 : i32
    return %arg0, %arg1, %c0_i32 : i32, i32, i32
  }
  func.func @transform_1(%arg0: i32, %arg1: i32, %arg2: i32) -> (i32, i32, i32) {
    %c0_i32 = arith.constant 0 : i32
    %c0_i32_0 = arith.constant 0 : i32
    return %arg0, %c0_i32, %arg2 : i32, i32, i32
  }
  func.func @transform_2(%arg0: i32, %arg1: i32, %arg2: i32) -> (i32, i32, i32) {
    %c0_i32 = arith.constant 0 : i32
    %c0_i32_0 = arith.constant 0 : i32
    return %arg0, %c0_i32, %arg2 : i32, i32, i32
  }
  func.func @transform_3(%arg0: i32, %arg1: i32, %arg2: i32) -> (i32, i32, i32) {
    %c0_i32 = arith.constant 0 : i32
    %c0_i32_0 = arith.constant 0 : i32
    return %arg0, %c0_i32, %arg2 : i32, i32, i32
  }
  func.func @transform_4(%arg0: i32, %arg1: i32, %arg2: i32) -> (i32, i32, i32) {
    %c0_i32 = arith.constant 0 : i32
    %c0_i32_0 = arith.constant 0 : i32
    return %arg0, %c0_i32, %arg2 : i32, i32, i32
  }
  func.func @transform_5(%arg0: i32, %arg1: i32, %arg2: i32) -> (i32, i32, i32) {
    %c0_i32 = arith.constant 0 : i32
    %c0_i32_0 = arith.constant 0 : i32
    return %arg0, %arg2, %c0_i32 : i32, i32, i32
  }
  func.func @transform_6(%arg0: i32, %arg1: i32, %arg2: i32) -> (i32, i32, i32) {
    %c0_i32 = arith.constant 0 : i32
    %c0_i32_0 = arith.constant 0 : i32
    %c0_i32_1 = arith.constant 0 : i32
    return %arg0, %c0_i32, %c0_i32_0 : i32, i32, i32
  }
  func.func @transform_7(%arg0: i32, %arg1: i32, %arg2: i32) -> (i32, i32, i32) {
    %c0_i32 = arith.constant 0 : i32
    %c0_i32_0 = arith.constant 0 : i32
    return %arg0, %arg1, %c0_i32 : i32, i32, i32
  }
}

</mosaic_0001>

<llo_original>
// kernel: eq.1
$region0: #{eq.1}
  %s0 = inlined_call_operand.vmem [shape: s32[2,8,2], index: 0, kind: input, shape index: {}]
  %s1 = inlined_call_operand.vmem [shape: s32[16,2], index: 1, kind: output, shape index: {}]
  $region1: #{eq.1} parent=0
    #allocation0 [shape = 'u8[4096]{0}', space=vmem, size = 0x1000, scoped, tag = 'scoped mem for output reshape']
    #allocation1 [shape = 'u8[8192]{0}', space=vmem, size = 0x2000, scoped, tag = 'scoped mem for input reshape']
    %s3 = sshllo.u32 0, 2
    %s4 = scalar_lea.vmem %s0, 2
    %v5 = vld [vmem:[%s4] sm:%s3]
    %s6 = scalar_lea.vmem [#allocation1], 8
    %7 = vst [vmem:[%s6] sm:%s3] %v5
    %v8 = vld [vmem:[%s0] sm:%s3]
    %9 = vst [vmem:[#allocation1] sm:%s3] %v8
    %s10 = smov 3
    %v11 = vld [vmem:[#allocation1] ss:$8 sm:%s10]
    %vm12 = vcmask 64512
    %13 = vst.msk [vmem:[#allocation0] sm:$0x3] %vm12, %v11
    %s14 = scalar_lea.vmem [#allocation1], 1
    %s15 = smov 3
    %v16 = vld [vmem:[%s14] ss:$8 sm:%s15]
    %17 = vrot.lane.b32.xlu0 %v16, 8
    %v18 = vpop.permute.xlu0 %17
    %vm19 = vcmask 130112
    %20 = vst.msk [vmem:[#allocation0] sm:$0x3] %vm19, %v18
    %s22 = sshllo.u32 0, 2
    %v24 = vld [vmem:[#allocation0] sm:%s22]
    %s25 = sshllo.u32 0, 2
    %26 = vst [vmem:[%s1] sm:%s25] %v24

// kernel: mul.15
$region0: #{mul.15}
  %s0 = inlined_call_operand.vmem [shape: f32[64], index: 0, kind: input, shape index: {}]
  %s1 = inlined_call_operand.vmem [shape: f32[4,16], index: 1, kind: output, shape index: {}]
  $region1: #{mul.15} parent=0
    #allocation0 [shape = 'u8[4096]{0}', space=vmem, size = 0x1000, scoped, tag = 'scoped mem for output reshape']
    #allocation1 [shape = 'u8[4096]{0}', space=vmem, size = 0x1000, scoped, tag = 'scoped mem for input reshape']
    %s3 = sshllo.u32 0, 1
    %v4 = vld [vmem:[%s0] sm:%s3]
    %5 = vst [vmem:[#allocation1] sm:%s3] %v4
    %v6 = vld [vmem:[#allocation1] sm:$0x1]
    %vm7 = vcmask 130048
    %8 = vst.msk [vmem:[#allocation0] sm:$0x1] %vm7, %v6
    %v9 = vld [vmem:[#allocation1] sm:$0x1]
    %10 = vrot.lane.b32.xlu0 %v9, 112
    %v11 = vpop.permute.xlu0 %10
    %vm12 = vcmask 130048
    %s13 = scalar_lea.vmem [#allocation0], 1
    %14 = vst.msk [vmem:[%s13] sm:$0x1] %vm12, %v11
    %v15 = vld [vmem:[#allocation1] sm:$0x1]
    %16 = vrot.lane.b32.xlu0 %v15, 96
    %v17 = vpop.permute.xlu0 %16
    %vm18 = vcmask 130048
    %s19 = scalar_lea.vmem [#allocation0], 2
    %20 = vst.msk [vmem:[%s19] sm:$0x1] %vm18, %v17
    %v21 = vld [vmem:[#allocation1] sm:$0x1]
    %22 = vrot.lane.b32.xlu0 %v21, 80
    %v23 = vpop.permute.xlu0 %22
    %vm24 = vcmask 130048
    %s25 = scalar_lea.vmem [#allocation0], 3
    %26 = vst.msk [vmem:[%s25] sm:$0x1] %vm24, %v23
    %s28 = sshllo.u32 0, 4
    %v30 = vld [vmem:[#allocation0] sm:%s28]
    %s31 = sshllo.u32 0, 4
    %32 = vst [vmem:[%s1] sm:%s31] %v30

// kernel: moe_pallas.1
$region0: #{moe_pallas.1}
  #allocation0 [shape = 'u32[]', space=smem, size = 0x4, offset = 0x4, fixed_abs, tag = 'smem constant byte address 0x4 - core index']
  #allocation1 [shape = 'u32[144,128]{1,0:T(1,128)}', space=vmem, size = 0x12000, scoped, tag = 'internal scratch']
  #allocation2 [shape = 'f32[16,128]{1,0:T(8,128)}', space=vmem, size = 0x2000, scoped, tag = 'scratch operand']
  %s0 = inlined_call_operand.vmem [shape: bf16[4,16,128], index: 0, kind: input, shape index: {}]
  %s1 = inlined_call_operand.vmem [shape: bf16[4,128,128], index: 1, kind: input, shape index: {}]
  %s2 = inlined_call_operand.vmem [shape: bf16[4,128,128], index: 2, kind: input, shape index: {}]
  %s3 = inlined_call_operand.vmem [shape: f32[4,1,128], index: 3, kind: input, shape index: {}]
  %s4 = inlined_call_operand.vmem [shape: f32[4,1,128], index: 4, kind: input, shape index: {}]
  %s5 = inlined_call_operand.vmem [shape: bf16[4,128,128], index: 5, kind: input, shape index: {}]
  %s6 = inlined_call_operand.vmem [shape: f32[4,1,128], index: 6, kind: input, shape index: {}]
  %s7 = inlined_call_operand.vmem [shape: bf16[4,16,128], index: 7, kind: output, shape index: {}]
  %s8 = sld [smem:[#allocation0]]
  $region69: #{moe_pallas.1} parent=0
    _
  %s10 = ssub.s32 1, %s8
  %s11 = scalar_select 0, %s10, %s8
  loop: start=0, step=1, limit=6
  $region2: #{moe_pallas.1} parent=0 // loop_pre_header
    _
  $region3: #{moe_pallas.1} parent=0 // loop_header
    %s13 = sphi 0, %s17
    %p14 = scmp.ge.s32.totalorder %s13, 6
    %s20 = sphi 0, %s39
    %s21 = sphi 0, %s35
    %s22 = sphi 0, %s31
    %s23 = sphi 0, %s20
    %s24 = sphi 0, %s21
    %s25 = sphi 0, %s22
    %s26 = sphi 0, %s23
    %s27 = sphi 0, %s24
    %s28 = sphi 0, %s25
    %s44 = sphi 0, %s46
    %s47 = sphi 0, %s44
    %s48 = sphi 0, %s47
    %s64 = sphi 0, %s48
    %s72 = sphi 0, %s74
    %s75 = sphi 0, %s72
    %s76 = sphi 0, %s75
    %s92 = sphi 0, %s76
    %s100 = sphi 0, %s102
    %s103 = sphi 0, %s100
    %s104 = sphi 0, %s103
    %s120 = sphi 0, %s104
    %s128 = sphi 0, %s130
    %s131 = sphi 0, %s128
    %s132 = sphi 0, %s131
    %s148 = sphi 0, %s132
    %s156 = sphi 0, %s158
    %s159 = sphi 0, %s156
    %s160 = sphi 0, %s159
    %s176 = sphi 0, %s160
    %s184 = sphi 0, %s186
    %s187 = sphi 0, %s184
    %s188 = sphi 0, %s187
    %s204 = sphi 0, %s188
    %s210 = sphi 0, %s212
    %s213 = sphi 0, %s210
    %s214 = sphi 0, %s213
    %s230 = sphi 0, %s214
    %s238 = sphi 0, %s240
    %s241 = sphi 0, %s238
    %s242 = sphi 0, %s241
    %s258 = sphi 0, %s242
  $region4: #{moe_pallas.1} parent=0 // loop_header_branch
    %16 = sbr.rel (%p14) target = $region8
  $region5: #{moe_pallas.1} parent=0 // loop_body
    %s18 = ssub.s32 %s13, 1
    %s19 = ssub.s32 %s13, 2
    %s29 = sadd.s32 1, %s22
    %p30 = scmp.ge.s32.totalorder %s29, 1
    %s31 = scalar_select %p30, 0, %s29
    %s32 = sadd.s32 1, %s21
    %s33 = scalar_select %p30, %s32, %s21
    %p34 = scmp.ge.s32.totalorder %s33, 1
    %s35 = scalar_select %p34, 0, %s33
    %s36 = sadd.s32 1, %s20
    %s37 = scalar_select %p34, %s36, %s20
    %p38 = scmp.ge.s32.totalorder %s37, 4
    %s39 = scalar_select %p38, 0, %s37
    %s40 = ssub.s32 %s20, %s39
    %s41 = ssub.s32 %s21, %s35
    %s42 = sor.u32 %s40, %s41
    %p43 = scmp.eq.s32.totalorder %s42, 0
    %s45 = sadd.s32 %s44, 1
    %s46 = scalar_select %p43, %s44, %s45
    %p49 = pneg %p43
    %p50 = scmp.eq.s32.totalorder %s13, 3
    %p51 = por %p49, %p50
    %p52 = scmp.ne.s32.totalorder %s44, %s47
    %p53 = scmp.eq.s32.totalorder %s13, 0
    %p54 = por %p52, %p53
    %p55 = scmp.ne.s32.totalorder %s44, %s47
    %p56 = scmp.eq.s32.totalorder %s18, 3
    %p57 = por %p55, %p56
    %p58 = scmp.ne.s32.totalorder %s47, %s48
    %p59 = scmp.eq.s32.totalorder %s18, 0
    %p60 = por %p58, %p59
    %p61 = scmp.ne.s32.totalorder %s47, %s48
    %p62 = scmp.eq.s32.totalorder %s19, 3
    %p63 = por %p61, %p62
    %p65 = scmp.ne.s32.totalorder %s48, %s64
    %p66 = scmp.eq.s32.totalorder %s19, 0
    %p67 = por %p65, %p66
    %s68 = ssub.s32 %s20, %s39
    %s69 = ssub.s32 %s22, %s31
    %s70 = sor.u32 %s68, %s69
    %p71 = scmp.eq.s32.totalorder %s70, 0
    %s73 = sadd.s32 %s72, 1
    %s74 = scalar_select %p71, %s72, %s73
    %p77 = pneg %p71
    %p78 = scmp.eq.s32.totalorder %s13, 3
    %p79 = por %p77, %p78
    %p80 = scmp.ne.s32.totalorder %s72, %s75
    %p81 = scmp.eq.s32.totalorder %s13, 0
    %p82 = por %p80, %p81
    %p83 = scmp.ne.s32.totalorder %s72, %s75
    %p84 = scmp.eq.s32.totalorder %s18, 3
    %p85 = por %p83, %p84
    %p86 = scmp.ne.s32.totalorder %s75, %s76
    %p87 = scmp.eq.s32.totalorder %s18, 0
    %p88 = por %p86, %p87
    %p89 = scmp.ne.s32.totalorder %s75, %s76
    %p90 = scmp.eq.s32.totalorder %s19, 3
    %p91 = por %p89, %p90
    %p93 = scmp.ne.s32.totalorder %s76, %s92
    %p94 = scmp.eq.s32.totalorder %s19, 0
    %p95 = por %p93, %p94
    %s96 = ssub.s32 %s20, %s39
    %s97 = ssub.s32 %s22, %s31
    %s98 = sor.u32 %s96, %s97
    %p99 = scmp.eq.s32.totalorder %s98, 0
    %s101 = sadd.s32 %s100, 1
    %s102 = scalar_select %p99, %s100, %s101
    %p105 = pneg %p99
    %p106 = scmp.eq.s32.totalorder %s13, 3
    %p107 = por %p105, %p106
    %p108 = scmp.ne.s32.totalorder %s100, %s103
    %p109 = scmp.eq.s32.totalorder %s13, 0
    %p110 = por %p108, %p109
    %p111 = scmp.ne.s32.totalorder %s100, %s103
    %p112 = scmp.eq.s32.totalorder %s18, 3
    %p113 = por %p111, %p112
    %p114 = scmp.ne.s32.totalorder %s103, %s104
    %p115 = scmp.eq.s32.totalorder %s18, 0
    %p116 = por %p114, %p115
    %p117 = scmp.ne.s32.totalorder %s103, %s104
    %p118 = scmp.eq.s32.totalorder %s19, 3
    %p119 = por %p117, %p118
    %p121 = scmp.ne.s32.totalorder %s104, %s120
    %p122 = scmp.eq.s32.totalorder %s19, 0
    %p123 = por %p121, %p122
    %s124 = ssub.s32 %s20, %s39
    %s125 = ssub.s32 %s22, %s31
    %s126 = sor.u32 %s124, %s125
    %p127 = scmp.eq.s32.totalorder %s126, 0
    %s129 = sadd.s32 %s128, 1
    %s130 = scalar_select %p127, %s128, %s129
    %p133 = pneg %p127
    %p134 = scmp.eq.s32.totalorder %s13, 3
    %p135 = por %p133, %p134
    %p136 = scmp.ne.s32.totalorder %s128, %s131
    %p137 = scmp.eq.s32.totalorder %s13, 0
    %p138 = por %p136, %p137
    %p139 = scmp.ne.s32.totalorder %s128, %s131
    %p140 = scmp.eq.s32.totalorder %s18, 3
    %p141 = por %p139, %p140
    %p142 = scmp.ne.s32.totalorder %s131, %s132
    %p143 = scmp.eq.s32.totalorder %s18, 0
    %p144 = por %p142, %p143
    %p145 = scmp.ne.s32.totalorder %s131, %s132
    %p146 = scmp.eq.s32.totalorder %s19, 3
    %p147 = por %p145, %p146
    %p149 = scmp.ne.s32.totalorder %s132, %s148
    %p150 = scmp.eq.s32.totalorder %s19, 0
    %p151 = por %p149, %p150
    %s152 = ssub.s32 %s20, %s39
    %s153 = ssub.s32 %s22, %s31
    %s154 = sor.u32 %s152, %s153
    %p155 = scmp.eq.s32.totalorder %s154, 0
    %s157 = sadd.s32 %s156, 1
    %s158 = scalar_select %p155, %s156, %s157
    %p161 = pneg %p155
    %p162 = scmp.eq.s32.totalorder %s13, 3
    %p163 = por %p161, %p162
    %p164 = scmp.ne.s32.totalorder %s156, %s159
    %p165 = scmp.eq.s32.totalorder %s13, 0
    %p166 = por %p164, %p165
    %p167 = scmp.ne.s32.totalorder %s156, %s159
    %p168 = scmp.eq.s32.totalorder %s18, 3
    %p169 = por %p167, %p168
    %p170 = scmp.ne.s32.totalorder %s159, %s160
    %p171 = scmp.eq.s32.totalorder %s18, 0
    %p172 = por %p170, %p171
    %p173 = scmp.ne.s32.totalorder %s159, %s160
    %p174 = scmp.eq.s32.totalorder %s19, 3
    %p175 = por %p173, %p174
    %p177 = scmp.ne.s32.totalorder %s160, %s176
    %p178 = scmp.eq.s32.totalorder %s19, 0
    %p179 = por %p177, %p178
    %s180 = ssub.s32 %s20, %s39
    %s181 = ssub.s32 %s22, %s31
    %s182 = sor.u32 %s180, %s181
    %p183 = scmp.eq.s32.totalorder %s182, 0
    %s185 = sadd.s32 %s184, 1
    %s186 = scalar_select %p183, %s184, %s185
    %p189 = pneg %p183
    %p190 = scmp.eq.s32.totalorder %s13, 3
    %p191 = por %p189, %p190
    %p192 = scmp.ne.s32.totalorder %s184, %s187
    %p193 = scmp.eq.s32.totalorder %s13, 0
    %p194 = por %p192, %p193
    %p195 = scmp.ne.s32.totalorder %s184, %s187
    %p196 = scmp.eq.s32.totalorder %s18, 3
    %p197 = por %p195, %p196
    %p198 = scmp.ne.s32.totalorder %s187, %s188
    %p199 = scmp.eq.s32.totalorder %s18, 0
    %p200 = por %p198, %p199
    %p201 = scmp.ne.s32.totalorder %s187, %s188
    %p202 = scmp.eq.s32.totalorder %s19, 3
    %p203 = por %p201, %p202
    %p205 = scmp.ne.s32.totalorder %s188, %s204
    %p206 = scmp.eq.s32.totalorder %s19, 0
    %p207 = por %p205, %p206
    %s208 = ssub.s32 %s20, %s39
    %p209 = scmp.eq.s32.totalorder %s208, 0
    %s211 = sadd.s32 %s210, 1
    %s212 = scalar_select %p209, %s210, %s211
    %p215 = pneg %p209
    %p216 = scmp.eq.s32.totalorder %s13, 3
    %p217 = por %p215, %p216
    %p218 = scmp.ne.s32.totalorder %s210, %s213
    %p219 = scmp.eq.s32.totalorder %s13, 0
    %p220 = por %p218, %p219
    %p221 = scmp.ne.s32.totalorder %s210, %s213
    %p222 = scmp.eq.s32.totalorder %s18, 3
    %p223 = por %p221, %p222
    %p224 = scmp.ne.s32.totalorder %s213, %s214
    %p225 = scmp.eq.s32.totalorder %s18, 0
    %p226 = por %p224, %p225
    %p227 = scmp.ne.s32.totalorder %s213, %s214
    %p228 = scmp.eq.s32.totalorder %s19, 3
    %p229 = por %p227, %p228
    %p231 = scmp.ne.s32.totalorder %s214, %s230
    %p232 = scmp.eq.s32.totalorder %s19, 0
    %p233 = por %p231, %p232
    %s234 = ssub.s32 %s20, %s39
    %s235 = ssub.s32 %s21, %s35
    %s236 = sor.u32 %s234, %s235
    %p237 = scmp.eq.s32.totalorder %s236, 0
    %s239 = sadd.s32 %s238, 1
    %s240 = scalar_select %p237, %s238, %s239
    %p243 = pneg %p237
    %p244 = scmp.eq.s32.totalorder %s13, 3
    %p245 = por %p243, %p244
    %p246 = scmp.ne.s32.totalorder %s238, %s241
    %p247 = scmp.eq.s32.totalorder %s13, 0
    %p248 = por %p246, %p247
    %p249 = scmp.ne.s32.totalorder %s238, %s241
    %p250 = scmp.eq.s32.totalorder %s18, 3
    %p251 = por %p249, %p250
    %p252 = scmp.ne.s32.totalorder %s241, %s242
    %p253 = scmp.eq.s32.totalorder %s18, 0
    %p254 = por %p252, %p253
    %p255 = scmp.ne.s32.totalorder %s241, %s242
    %p256 = scmp.eq.s32.totalorder %s19, 3
    %p257 = por %p255, %p256
    %p259 = scmp.ne.s32.totalorder %s242, %s258
    %p260 = scmp.eq.s32.totalorder %s19, 0
    %p261 = por %p259, %p260
    %p262 = scmp.le.s32.totalorder 1, %s13
    %p263 = scmp.lt.s32.totalorder %s13, 5
    %p264 = pnand %p262, %p263
    %p265 = pneg %p264
    // Predicated region
    $region9: #{moe_pallas.1} parent=5 // pred_check
      _
    $region10: #{moe_pallas.1} parent=5 // pred_check_branch
      %267 = sbr.rel (%p264) target = $region12
    $region11: #{moe_pallas.1} parent=5 // pred_region
      %s268 = ssub.s32 %s13, 1
    $region12: #{moe_pallas.1} parent=5 // pred_fallthru
      _
    %p269 = scmp.lt.s32.totalorder %s13, 4
    // Predicated region
    $region13: #{moe_pallas.1} parent=5 // pred_check
      %p270 = pneg %p269
    $region14: #{moe_pallas.1} parent=5 // pred_check_branch
      %272 = sbr.rel (%p270) target = $region16
    $region15: #{moe_pallas.1} parent=5 // pred_region
      // Predicated region
      $region17: #{moe_pallas.1} parent=15 // pred_check
        %p273 = pneg %p54
      $region18: #{moe_pallas.1} parent=15 // pred_check_branch
        %275 = sbr.rel (%p273) target = $region20
      $region19: #{moe_pallas.1} parent=15 // pred_region
        %s276 = smul.u32 2, %s21
        %p277 = scmp.lt.s32.totalorder %s20, 3
        %s278 = scalar_select %p277, %s20, 3
        %p279 = scmp.lt.s32.totalorder %s276, 1
        %s280 = scalar_select %p279, %s276, 1
        %s281 = smul.addr %s278, 2
        %s282 = sadd.s32 %s280, %s281
        %s283 = smul.addr %s282, 4
        %s284 = scalar_lea.vmem %s0, %s283
        %s285 = smul.u32 2, %s21
      $region20: #{moe_pallas.1} parent=15 // pred_fallthru
        _
      // Predicated region
      $region21: #{moe_pallas.1} parent=15 // pred_check
        %p286 = pneg %p82
      $region22: #{moe_pallas.1} parent=15 // pred_check_branch
        %288 = sbr.rel (%p286) target = $region24
      $region23: #{moe_pallas.1} parent=15 // pred_region
        %p289 = scmp.lt.s32.totalorder %s20, 3
        %s290 = scalar_select %p289, %s20, 3
        %p291 = scmp.lt.s32.totalorder %s22, 0
        %s292 = scalar_select %p291, %s22, 0
        %s293 = smul.addr %s290, 16
        %s294 = sadd.s32 %s292, %s293
        %s295 = smul.addr %s294, 4
        %s296 = scalar_lea.vmem %s1, %s295
      $region24: #{moe_pallas.1} parent=15 // pred_fallthru
        _
      // Predicated region
      $region25: #{moe_pallas.1} parent=15 // pred_check
        %p297 = pneg %p110
      $region26: #{moe_pallas.1} parent=15 // pred_check_branch
        %299 = sbr.rel (%p297) target = $region28
      $region27: #{moe_pallas.1} parent=15 // pred_region
        %p300 = scmp.lt.s32.totalorder %s20, 3
        %s301 = scalar_select %p300, %s20, 3
        %p302 = scmp.lt.s32.totalorder %s22, 0
        %s303 = scalar_select %p302, %s22, 0
        %s304 = smul.addr %s301, 16
        %s305 = sadd.s32 %s303, %s304
        %s306 = smul.addr %s305, 4
        %s307 = scalar_lea.vmem %s2, %s306
      $region28: #{moe_pallas.1} parent=15 // pred_fallthru
        _
      // Predicated region
      $region29: #{moe_pallas.1} parent=15 // pred_check
        %p308 = pneg %p138
      $region30: #{moe_pallas.1} parent=15 // pred_check_branch
        %310 = sbr.rel (%p308) target = $region32
      $region31: #{moe_pallas.1} parent=15 // pred_region
        %p311 = scmp.lt.s32.totalorder %s20, 3
        %s312 = scalar_select %p311, %s20, 3
        %p313 = scmp.lt.s32.totalorder %s22, 0
        %s314 = scalar_select %p313, %s22, 0
        %s315 = sadd.s32 %s314, %s312
        %s316 = scalar_lea.vmem %s3, %s315
      $region32: #{moe_pallas.1} parent=15 // pred_fallthru
        _
      // Predicated region
      $region33: #{moe_pallas.1} parent=15 // pred_check
        %p317 = pneg %p166
      $region34: #{moe_pallas.1} parent=15 // pred_check_branch
        %319 = sbr.rel (%p317) target = $region36
      $region35: #{moe_pallas.1} parent=15 // pred_region
        %p320 = scmp.lt.s32.totalorder %s20, 3
        %s321 = scalar_select %p320, %s20, 3
        %p322 = scmp.lt.s32.totalorder %s22, 0
        %s323 = scalar_select %p322, %s22, 0
        %s324 = sadd.s32 %s323, %s321
        %s325 = scalar_lea.vmem %s4, %s324
      $region36: #{moe_pallas.1} parent=15 // pred_fallthru
        _
      // Predicated region
      $region37: #{moe_pallas.1} parent=15 // pred_check
        %p326 = pneg %p194
      $region38: #{moe_pallas.1} parent=15 // pred_check_branch
        %328 = sbr.rel (%p326) target = $region40
      $region39: #{moe_pallas.1} parent=15 // pred_region
        %s329 = smul.u32 16, %s22
        %p330 = scmp.lt.s32.totalorder %s20, 3
        %s331 = scalar_select %p330, %s20, 3
        %p332 = scmp.lt.s32.totalorder %s329, 15
        %s333 = scalar_select %p332, %s329, 15
        %s334 = smul.addr %s331, 16
        %s335 = sadd.s32 %s333, %s334
        %s336 = smul.addr %s335, 4
        %s337 = scalar_lea.vmem %s5, %s336
        %s338 = smul.u32 16, %s22
      $region40: #{moe_pallas.1} parent=15 // pred_fallthru
        _
      // Predicated region
      $region41: #{moe_pallas.1} parent=15 // pred_check
        %p339 = pneg %p220
      $region42: #{moe_pallas.1} parent=15 // pred_check_branch
        %341 = sbr.rel (%p339) target = $region44
      $region43: #{moe_pallas.1} parent=15 // pred_region
        %p342 = scmp.lt.s32.totalorder %s20, 3
        %s343 = scalar_select %p342, %s20, 3
        %s344 = scalar_lea.vmem %s6, %s343
      $region44: #{moe_pallas.1} parent=15 // pred_fallthru
        _
    $region16: #{moe_pallas.1} parent=5 // pred_fallthru
      _
    %p345 = scmp.le.s32.totalorder 1, %s13
    %p346 = scmp.lt.s32.totalorder %s13, 5
    %p347 = pnand %p345, %p346
    %p348 = pneg %p347
    // Predicated region
    $region45: #{moe_pallas.1} parent=5 // pred_check
      _
    $region46: #{moe_pallas.1} parent=5 // pred_check_branch
      %350 = sbr.rel (%p347) target = $region48
    $region47: #{moe_pallas.1} parent=5 // pred_region
      %s351 = ssub.s32 %s13, 1
      %s352 = smul.u32 2, %s24
      %p353 = scmp.lt.s32.totalorder %s23, 3
      %s354 = scalar_select %p353, %s23, 3
      %p355 = scmp.lt.s32.totalorder %s352, 1
      %s356 = scalar_select %p355, %s352, 1
      %s357 = smul.addr %s354, 2
      %s358 = sadd.s32 %s356, %s357
      %s359 = smul.addr %s358, 4
      %s360 = scalar_lea.vmem %s0, %s359
      %p361 = pneg %p60
      %p362 = pneg %p57
      %p363 = scmp.lt.s32.totalorder %s23, 3
      %s364 = scalar_select %p363, %s23, 3
      %p365 = scmp.lt.s32.totalorder %s25, 0
      %s366 = scalar_select %p365, %s25, 0
      %s367 = smul.addr %s364, 16
      %s368 = sadd.s32 %s366, %s367
      %s369 = smul.addr %s368, 4
      %s370 = scalar_lea.vmem %s1, %s369
      %p371 = pneg %p88
      %p372 = pneg %p85
      %p373 = scmp.lt.s32.totalorder %s23, 3
      %s374 = scalar_select %p373, %s23, 3
      %p375 = scmp.lt.s32.totalorder %s25, 0
      %s376 = scalar_select %p375, %s25, 0
      %s377 = smul.addr %s374, 16
      %s378 = sadd.s32 %s376, %s377
      %s379 = smul.addr %s378, 4
      %s380 = scalar_lea.vmem %s2, %s379
      %p381 = pneg %p116
      %p382 = pneg %p113
      %p383 = scmp.lt.s32.totalorder %s23, 3
      %s384 = scalar_select %p383, %s23, 3
      %p385 = scmp.lt.s32.totalorder %s25, 0
      %s386 = scalar_select %p385, %s25, 0
      %s387 = sadd.s32 %s386, %s384
      %s388 = scalar_lea.vmem %s3, %s387
      %p389 = pneg %p144
      %p390 = pneg %p141
      %p391 = scmp.lt.s32.totalorder %s23, 3
      %s392 = scalar_select %p391, %s23, 3
      %p393 = scmp.lt.s32.totalorder %s25, 0
      %s394 = scalar_select %p393, %s25, 0
      %s395 = sadd.s32 %s394, %s392
      %s396 = scalar_lea.vmem %s4, %s395
      %p397 = pneg %p172
      %p398 = pneg %p169
      %s399 = smul.u32 16, %s25
      %p400 = scmp.lt.s32.totalorder %s23, 3
      %s401 = scalar_select %p400, %s23, 3
      %p402 = scmp.lt.s32.totalorder %s399, 15
      %s403 = scalar_select %p402, %s399, 15
      %s404 = smul.addr %s401, 16
      %s405 = sadd.s32 %s403, %s404
      %s406 = smul.addr %s405, 4
      %s407 = scalar_lea.vmem %s5, %s406
      %p408 = pneg %p200
      %p409 = pneg %p197
      %p410 = scmp.lt.s32.totalorder %s23, 3
      %s411 = scalar_select %p410, %s23, 3
      %s412 = scalar_lea.vmem %s6, %s411
      %p413 = pneg %p226
      %p414 = pneg %p223
      %p415 = pneg %p254
      %p416 = pneg %p251
      %s417 = smul.u32 2, %s24
      %p418 = scmp.lt.s32.totalorder %s23, 3
      %s419 = scalar_select %p418, %s23, 3
      %p420 = scmp.lt.s32.totalorder %s417, 1
      %s421 = scalar_select %p420, %s417, 1
      %s422 = smul.addr %s419, 2
      %s423 = sadd.s32 %s421, %s422
      %s424 = smul.addr %s423, 4
      %s425 = scalar_lea.vmem %s7, %s424
      %s426 = smul.u32 2, %s24
      %p427 = scmp.lt.s32.totalorder %s23, 3
      %s428 = scalar_select %p427, %s23, 3
      %p429 = scmp.lt.s32.totalorder %s426, 1
      %s430 = scalar_select %p429, %s426, 1
      %s431 = smul.addr %s428, 2
      %s432 = sadd.s32 %s430, %s431
      %s433 = smul.addr %s432, 4
      %s434 = scalar_lea.vmem %s0, %s433
      %s435 = smul.u32 2, %s24
      %p436 = scmp.lt.s32.totalorder %s23, 3
      %s437 = scalar_select %p436, %s23, 3
      %p438 = scmp.lt.s32.totalorder %s25, 0
      %s439 = scalar_select %p438, %s25, 0
      %s440 = smul.addr %s437, 16
      %s441 = sadd.s32 %s439, %s440
      %s442 = smul.addr %s441, 4
      %s443 = scalar_lea.vmem %s1, %s442
      %p444 = scmp.lt.s32.totalorder %s23, 3
      %s445 = scalar_select %p444, %s23, 3
      %p446 = scmp.lt.s32.totalorder %s25, 0
      %s447 = scalar_select %p446, %s25, 0
      %s448 = smul.addr %s445, 16
      %s449 = sadd.s32 %s447, %s448
      %s450 = smul.addr %s449, 4
      %s451 = scalar_lea.vmem %s2, %s450
      %p452 = scmp.lt.s32.totalorder %s23, 3
      %s453 = scalar_select %p452, %s23, 3
      %p454 = scmp.lt.s32.totalorder %s25, 0
      %s455 = scalar_select %p454, %s25, 0
      %s456 = sadd.s32 %s455, %s453
      %s457 = scalar_lea.vmem %s3, %s456
      %p458 = scmp.lt.s32.totalorder %s23, 3
      %s459 = scalar_select %p458, %s23, 3
      %p460 = scmp.lt.s32.totalorder %s25, 0
      %s461 = scalar_select %p460, %s25, 0
      %s462 = sadd.s32 %s461, %s459
      %s463 = scalar_lea.vmem %s4, %s462
      %s464 = smul.u32 16, %s25
      %p465 = scmp.lt.s32.totalorder %s23, 3
      %s466 = scalar_select %p465, %s23, 3
      %p467 = scmp.lt.s32.totalorder %s464, 15
      %s468 = scalar_select %p467, %s464, 15
      %s469 = smul.addr %s466, 16
      %s470 = sadd.s32 %s468, %s469
      %s471 = smul.addr %s470, 4
      %s472 = scalar_lea.vmem %s5, %s471
      %s473 = smul.u32 16, %s25
      %p474 = scmp.lt.s32.totalorder %s23, 3
      %s475 = scalar_select %p474, %s23, 3
      %s476 = scalar_lea.vmem %s6, %s475
      %s477 = smul.u32 2, %s24
      %p478 = scmp.lt.s32.totalorder %s23, 3
      %s479 = scalar_select %p478, %s23, 3
      %p480 = scmp.lt.s32.totalorder %s477, 1
      %s481 = scalar_select %p480, %s477, 1
      %s482 = smul.addr %s479, 2
      %s483 = sadd.s32 %s481, %s482
      %s484 = smul.addr %s483, 4
      %s485 = scalar_lea.vmem %s7, %s484
      %s486 = smul.u32 2, %s24
      %p488 = scmp.eq.s32.totalorder %s25, 0
      // Predicated region
      $region49: #{moe_pallas.1} parent=47 // pred_check
        %p489 = pneg %p488
      $region50: #{moe_pallas.1} parent=47 // pred_check_branch
        %491 = sbr.rel (%p489) target = $region52
      $region51: #{moe_pallas.1} parent=47 // pred_region
        %492 = vst [vmem:[#allocation2] sm:$0xff] 0.0
        %493 = vst [vmem:[#allocation2 + $0x8] sm:$0xff] 0.0
      $region52: #{moe_pallas.1} parent=47 // pred_fallthru
        _
      %v494 = vld [vmem:[%s434] sm:$0xf]
      %v495 = vld [vmem:[%s434 + $0x4] sm:$0xf]
      %v496 = vld [vmem:[%s443] sm:$0xf]
      %v497 = vld [vmem:[%s443 + $0x4] sm:$0xf]
      %v498 = vld [vmem:[%s443 + $0x8] sm:$0xf]
      %v499 = vld [vmem:[%s443 + $0xc] sm:$0xf]
      %v500 = vld [vmem:[%s443 + $0x10] sm:$0xf]
      %v501 = vld [vmem:[%s443 + $0x14] sm:$0xf]
      %v502 = vld [vmem:[%s443 + $0x18] sm:$0xf]
      %v503 = vld [vmem:[%s443 + $0x1c] sm:$0xf]
      %v504 = vld [vmem:[%s443 + $0x20] sm:$0xf]
      %v505 = vld [vmem:[%s443 + $0x24] sm:$0xf]
      %v506 = vld [vmem:[%s443 + $0x28] sm:$0xf]
      %v507 = vld [vmem:[%s443 + $0x2c] sm:$0xf]
      %v508 = vld [vmem:[%s443 + $0x30] sm:$0xf]
      %v509 = vld [vmem:[%s443 + $0x34] sm:$0xf]
      %v510 = vld [vmem:[%s443 + $0x38] sm:$0xf]
      %v511 = vld [vmem:[%s443 + $0x3c] sm:$0xf]
      %v512 = vld [vmem:[%s457] sm:$0x1]
      %v514 = vlaneseq
      %v515 = vshrl.u32 %v514, 7
      %v516 = vsub.s32 0, %v515
      %v517 = vrot.slane %v512, %v516
      %v521 = vunpack.c.l.b16 %v494
      %v522 = vunpack.c.l.b16 %v495
      %v523 = vpack.c.b16 %v522, %v521
      %v541 = vunpack.c.l.b16 %v496
      %v542 = vunpack.c.l.b16 %v497
      %v543 = vunpack.c.l.b16 %v498
      %v544 = vunpack.c.l.b16 %v499
      %v545 = vunpack.c.l.b16 %v500
      %v546 = vunpack.c.l.b16 %v501
      %v547 = vunpack.c.l.b16 %v502
      %v548 = vunpack.c.l.b16 %v503
      %v549 = vunpack.c.l.b16 %v504
      %v550 = vunpack.c.l.b16 %v505
      %v551 = vunpack.c.l.b16 %v506
      %v552 = vunpack.c.l.b16 %v507
      %v553 = vunpack.c.l.b16 %v508
      %v554 = vunpack.c.l.b16 %v509
      %v555 = vunpack.c.l.b16 %v510
      %v556 = vunpack.c.l.b16 %v511
      %v557 = vpack.c.b16 %v542, %v541
      %v558 = vpack.c.b16 %v544, %v543
      %v559 = vpack.c.b16 %v546, %v545
      %v560 = vpack.c.b16 %v548, %v547
      %v561 = vpack.c.b16 %v550, %v549
      %v562 = vpack.c.b16 %v552, %v551
      %v563 = vpack.c.b16 %v554, %v553
      %v564 = vpack.c.b16 %v556, %v555
      %573 = vmatprep.subr.bf16.mxu0 0
      %574 = vmatpush1.bf16.msra.mxu0 %v557
      %575 = vmatprep.subr.bf16.mxu0 0
      %576 = vmatpush1.bf16.msra.mxu0 %v558
      %577 = vmatprep.subr.bf16.mxu0 0
      %578 = vmatpush1.bf16.msra.mxu0 %v559
      %579 = vmatprep.subr.bf16.mxu0 0
      %580 = vmatpush1.bf16.msra.mxu0 %v560
      %581 = vmatprep.subr.bf16.mxu0 0
      %582 = vmatpush1.bf16.msra.mxu0 %v561
      %583 = vmatprep.subr.bf16.mxu0 0
      %584 = vmatpush1.bf16.msra.mxu0 %v562
      %585 = vmatprep.subr.bf16.mxu0 0
      %586 = vmatpush1.bf16.msra.mxu0 %v563
      %587 = vmatprep.subr.bf16.mxu0 0
      %588 = vmatpush1.bf16.msra.mxu0 %v564
      %589 = vmatprep.subr.bf16.mxu0 0
      %590 = vmatpush1.bf16.msra.mxu0 0
      %591 = vmatprep.subr.bf16.mxu0 0
      %592 = vmatpush1.bf16.msra.mxu0 0
      %593 = vmatprep.subr.bf16.mxu0 0
      %594 = vmatpush1.bf16.msra.mxu0 0
      %595 = vmatprep.subr.bf16.mxu0 0
      %596 = vmatpush1.bf16.msra.mxu0 0
      %597 = vmatprep.subr.bf16.mxu0 0
      %598 = vmatpush1.bf16.msra.mxu0 0
      %599 = vmatprep.subr.bf16.mxu0 0
      %600 = vmatpush1.bf16.msra.mxu0 0
      %601 = vmatprep.subr.bf16.mxu0 0
      %602 = vmatpush1.bf16.msra.mxu0 0
      %603 = vmatprep.subr.bf16.mxu0 0
      %604 = vmatpush1.bf16.msra.mxu0 0
      %605 = vmatprep.mubr.bf16.mxu0 0
      %606 = vmatmul.mubr.bf16.gmra.mrb[0].mxu0 %v523
      %v607 = vpop.f32.mrb[0].mxu0
      %v608 = vadd.f32 %v517, %v607
      %v609 = vpop.f32.mrb[0].mxu0
      %v610 = vpop.f32.mrb[0].mxu0
      %v611 = vadd.f32 %v517, %v610
      %v612 = vpop.f32.mrb[0].mxu0
      %613 = vdwg.mxu0
      %v614 = vld [vmem:[%s451] sm:$0xf]
      %v615 = vld [vmem:[%s451 + $0x4] sm:$0xf]
      %v616 = vld [vmem:[%s451 + $0x8] sm:$0xf]
      %v617 = vld [vmem:[%s451 + $0xc] sm:$0xf]
      %v618 = vld [vmem:[%s451 + $0x10] sm:$0xf]
      %v619 = vld [vmem:[%s451 + $0x14] sm:$0xf]
      %v620 = vld [vmem:[%s451 + $0x18] sm:$0xf]
      %v621 = vld [vmem:[%s451 + $0x1c] sm:$0xf]
      %v622 = vld [vmem:[%s451 + $0x20] sm:$0xf]
      %v623 = vld [vmem:[%s451 + $0x24] sm:$0xf]
      %v624 = vld [vmem:[%s451 + $0x28] sm:$0xf]
      %v625 = vld [vmem:[%s451 + $0x2c] sm:$0xf]
      %v626 = vld [vmem:[%s451 + $0x30] sm:$0xf]
      %v627 = vld [vmem:[%s451 + $0x34] sm:$0xf]
      %v628 = vld [vmem:[%s451 + $0x38] sm:$0xf]
      %v629 = vld [vmem:[%s451 + $0x3c] sm:$0xf]
      %v630 = vld [vmem:[%s463] sm:$0x1]
      %v632 = vlaneseq
      %v633 = vshrl.u32 %v632, 7
      %v634 = vsub.s32 0, %v633
      %v635 = vrot.slane %v630, %v634
      %v653 = vunpack.c.l.b16 %v614
      %v654 = vunpack.c.l.b16 %v615
      %v655 = vunpack.c.l.b16 %v616
      %v656 = vunpack.c.l.b16 %v617
      %v657 = vunpack.c.l.b16 %v618
      %v658 = vunpack.c.l.b16 %v619
      %v659 = vunpack.c.l.b16 %v620
      %v660 = vunpack.c.l.b16 %v621
      %v661 = vunpack.c.l.b16 %v622
      %v662 = vunpack.c.l.b16 %v623
      %v663 = vunpack.c.l.b16 %v624
      %v664 = vunpack.c.l.b16 %v625
      %v665 = vunpack.c.l.b16 %v626
      %v666 = vunpack.c.l.b16 %v627
      %v667 = vunpack.c.l.b16 %v628
      %v668 = vunpack.c.l.b16 %v629
      %v669 = vpack.c.b16 %v654, %v653
      %v670 = vpack.c.b16 %v656, %v655
      %v671 = vpack.c.b16 %v658, %v657
      %v672 = vpack.c.b16 %v660, %v659
      %v673 = vpack.c.b16 %v662, %v661
      %v674 = vpack.c.b16 %v664, %v663
      %v675 = vpack.c.b16 %v666, %v665
      %v676 = vpack.c.b16 %v668, %v667
      %685 = vmatprep.subr.bf16.mxu0 0
      %686 = vmatpush1.bf16.msra.mxu0 %v669
      %687 = vmatprep.subr.bf16.mxu0 0
      %688 = vmatpush1.bf16.msra.mxu0 %v670
      %689 = vmatprep.subr.bf16.mxu0 0
      %690 = vmatpush1.bf16.msra.mxu0 %v671
      %691 = vmatprep.subr.bf16.mxu0 0
      %692 = vmatpush1.bf16.msra.mxu0 %v672
      %693 = vmatprep.subr.bf16.mxu0 0
      %694 = vmatpush1.bf16.msra.mxu0 %v673
      %695 = vmatprep.subr.bf16.mxu0 0
      %696 = vmatpush1.bf16.msra.mxu0 %v674
      %697 = vmatprep.subr.bf16.mxu0 0
      %698 = vmatpush1.bf16.msra.mxu0 %v675
      %699 = vmatprep.subr.bf16.mxu0 0
      %700 = vmatpush1.bf16.msra.mxu0 %v676
      %701 = vmatprep.subr.bf16.mxu0 0
      %702 = vmatpush1.bf16.msra.mxu0 0
      %703 = vmatprep.subr.bf16.mxu0 0
      %704 = vmatpush1.bf16.msra.mxu0 0
      %705 = vmatprep.subr.bf16.mxu0 0
      %706 = vmatpush1.bf16.msra.mxu0 0
      %707 = vmatprep.subr.bf16.mxu0 0
      %708 = vmatpush1.bf16.msra.mxu0 0
      %709 = vmatprep.subr.bf16.mxu0 0
      %710 = vmatpush1.bf16.msra.mxu0 0
      %711 = vmatprep.subr.bf16.mxu0 0
      %712 = vmatpush1.bf16.msra.mxu0 0
      %713 = vmatprep.subr.bf16.mxu0 0
      %714 = vmatpush1.bf16.msra.mxu0 0
      %715 = vmatprep.subr.bf16.mxu0 0
      %716 = vmatpush1.bf16.msra.mxu0 0
      %717 = vmatprep.mubr.bf16.mxu0 0
      %718 = vmatmul.mubr.bf16.gmra.mrb[0].mxu0 %v523
      %v719 = vpop.f32.mrb[0].mxu0
      %v720 = vadd.f32 %v635, %v719
      %v721 = vpop.f32.mrb[0].mxu0
      %v722 = vpop.f32.mrb[0].mxu0
      %v723 = vadd.f32 %v635, %v722
      %v724 = vpop.f32.mrb[0].mxu0
      %725 = vdwg.mxu0
      %v726 = vxor.u32 %v608, 2147483648
      %v727 = vxor.u32 %v611, 2147483648
      %v728 = vmul.f32 %v726, 1.442695
      %v729 = vpow.pop %v728
      %v730 = vmul.f32 %v727, 1.442695
      %v731 = vpow.pop %v730
      %v732 = vadd.f32 %v729, 1.0
      %v733 = vadd.f32 %v731, 1.0
      %v734 = vrcp.pop %v732
      %v735 = vmul.f32 1.0, %v734
      %v736 = vrcp.pop %v733
      %v737 = vmul.f32 1.0, %v736
      %v738 = vmul.f32 %v608, %v735
      %v739 = vmul.f32 %v611, %v737
      %v740 = vmul.f32 %v738, %v720
      %v741 = vmul.f32 %v739, %v723
      %v742 = vld [vmem:[#allocation2] sm:$0xff]
      %v743 = vld [vmem:[#allocation2 + $0x8] sm:$0xff]
      %v744 = vpack.c.bf16 %v741, %v740
      %v745 = vld [vmem:[%s472] sm:$0xf]
      %v746 = vld [vmem:[%s472 + $0x4] sm:$0xf]
      %v747 = vld [vmem:[%s472 + $0x8] sm:$0xf]
      %v748 = vld [vmem:[%s472 + $0xc] sm:$0xf]
      %v749 = vld [vmem:[%s472 + $0x10] sm:$0xf]
      %v750 = vld [vmem:[%s472 + $0x14] sm:$0xf]
      %v751 = vld [vmem:[%s472 + $0x18] sm:$0xf]
      %v752 = vld [vmem:[%s472 + $0x1c] sm:$0xf]
      %v753 = vld [vmem:[%s472 + $0x20] sm:$0xf]
      %v754 = vld [vmem:[%s472 + $0x24] sm:$0xf]
      %v755 = vld [vmem:[%s472 + $0x28] sm:$0xf]
      %v756 = vld [vmem:[%s472 + $0x2c] sm:$0xf]
      %v757 = vld [vmem:[%s472 + $0x30] sm:$0xf]
      %v758 = vld [vmem:[%s472 + $0x34] sm:$0xf]
      %v759 = vld [vmem:[%s472 + $0x38] sm:$0xf]
      %v760 = vld [vmem:[%s472 + $0x3c] sm:$0xf]
      %v777 = vunpack.c.l.b16 %v745
      %v778 = vunpack.c.l.b16 %v746
      %v779 = vunpack.c.l.b16 %v747
      %v780 = vunpack.c.l.b16 %v748
      %v781 = vunpack.c.l.b16 %v749
      %v782 = vunpack.c.l.b16 %v750
      %v783 = vunpack.c.l.b16 %v751
      %v784 = vunpack.c.l.b16 %v752
      %v785 = vunpack.c.l.b16 %v753
      %v786 = vunpack.c.l.b16 %v754
      %v787 = vunpack.c.l.b16 %v755
      %v788 = vunpack.c.l.b16 %v756
      %v789 = vunpack.c.l.b16 %v757
      %v790 = vunpack.c.l.b16 %v758
      %v791 = vunpack.c.l.b16 %v759
      %v792 = vunpack.c.l.b16 %v760
      %v793 = vpack.c.b16 %v778, %v777
      %v794 = vpack.c.b16 %v780, %v779
      %v795 = vpack.c.b16 %v782, %v781
      %v796 = vpack.c.b16 %v784, %v783
      %v797 = vpack.c.b16 %v786, %v785
      %v798 = vpack.c.b16 %v788, %v787
      %v799 = vpack.c.b16 %v790, %v789
      %v800 = vpack.c.b16 %v792, %v791
      %809 = vmatprep.subr.bf16.mxu0 0
      %810 = vmatpush1.bf16.msra.mxu0 %v793
      %811 = vmatprep.subr.bf16.mxu0 0
      %812 = vmatpush1.bf16.msra.mxu0 %v794
      %813 = vmatprep.subr.bf16.mxu0 0
      %814 = vmatpush1.bf16.msra.mxu0 %v795
      %815 = vmatprep.subr.bf16.mxu0 0
      %816 = vmatpush1.bf16.msra.mxu0 %v796
      %817 = vmatprep.subr.bf16.mxu0 0
      %818 = vmatpush1.bf16.msra.mxu0 %v797
      %819 = vmatprep.subr.bf16.mxu0 0
      %820 = vmatpush1.bf16.msra.mxu0 %v798
      %821 = vmatprep.subr.bf16.mxu0 0
      %822 = vmatpush1.bf16.msra.mxu0 %v799
      %823 = vmatprep.subr.bf16.mxu0 0
      %824 = vmatpush1.bf16.msra.mxu0 %v800
      %825 = vmatprep.subr.bf16.mxu0 0
      %826 = vmatpush1.bf16.msra.mxu0 0
      %827 = vmatprep.subr.bf16.mxu0 0
      %828 = vmatpush1.bf16.msra.mxu0 0
      %829 = vmatprep.subr.bf16.mxu0 0
      %830 = vmatpush1.bf16.msra.mxu0 0
      %831 = vmatprep.subr.bf16.mxu0 0
      %832 = vmatpush1.bf16.msra.mxu0 0
      %833 = vmatprep.subr.bf16.mxu0 0
      %834 = vmatpush1.bf16.msra.mxu0 0
      %835 = vmatprep.subr.bf16.mxu0 0
      %836 = vmatpush1.bf16.msra.mxu0 0
      %837 = vmatprep.subr.bf16.mxu0 0
      %838 = vmatpush1.bf16.msra.mxu0 0
      %839 = vmatprep.subr.bf16.mxu0 0
      %840 = vmatpush1.bf16.msra.mxu0 0
      %841 = vmatprep.mubr.bf16.mxu0 0
      %842 = vmatmul.mubr.bf16.gmra.mrb[0].mxu0 %v744
      %v843 = vpop.f32.mrb[0].mxu0
      %v844 = vadd.f32 0.0, %v843
      %v845 = vpop.f32.mrb[0].mxu0
      %v846 = vpop.f32.mrb[0].mxu0
      %v847 = vadd.f32 0.0, %v846
      %v848 = vpop.f32.mrb[0].mxu0
      %849 = vdwg.mxu0
      %v850 = vadd.f32 %v742, %v844
      %v851 = vadd.f32 %v743, %v847
      %852 = vst [vmem:[#allocation2] sm:$0xff] %v850
      %853 = vst [vmem:[#allocation2 + $0x8] sm:$0xff] %v851
      // Predicated region
      $region53: #{moe_pallas.1} parent=47 // pred_check
        %p854 = pneg %p488
      $region54: #{moe_pallas.1} parent=47 // pred_check_branch
        %856 = sbr.rel (%p854) target = $region56
      $region55: #{moe_pallas.1} parent=47 // pred_region
        %v857 = vld [vmem:[#allocation2] sm:$0xff]
        %v858 = vld [vmem:[#allocation2 + $0x8] sm:$0xff]
        %v859 = vld [vmem:[%s476] sm:$0x1]
        %v861 = vlaneseq
        %v862 = vshrl.u32 %v861, 7
        %v863 = vsub.s32 0, %v862
        %v864 = vrot.slane %v859, %v863
        %v866 = vadd.f32 %v857, %v864
        %v867 = vadd.f32 %v858, %v864
        %v868 = vpack.c.bf16 %v867, %v866
        %v870 = vunpack.c.l.b16 %v868
        %v871 = vunpack.c.h.b16 %v868
        %v872 = vpack.c.b16 %v870, %v870
        %v873 = vpack.c.b16 %v871, %v871
        %876 = vst [vmem:[%s485] sm:$0xf] %v872
        %877 = vst [vmem:[%s485 + $0x4] sm:$0xf] %v873
      $region56: #{moe_pallas.1} parent=47 // pred_fallthru
        _
      %s878 = smul.u32 2, %s24
      %p879 = scmp.lt.s32.totalorder %s23, 3
      %s880 = scalar_select %p879, %s23, 3
      %p881 = scmp.lt.s32.totalorder %s878, 1
      %s882 = scalar_select %p881, %s878, 1
      %s883 = smul.addr %s880, 2
      %s884 = sadd.s32 %s882, %s883
      %s885 = smul.addr %s884, 4
      %s886 = scalar_lea.vmem %s7, %s885
      // Predicated region
      $region57: #{moe_pallas.1} parent=47 // pred_check
        %p887 = pneg %p251
      $region58: #{moe_pallas.1} parent=47 // pred_check_branch
        %889 = sbr.rel (%p887) target = $region60
      $region59: #{moe_pallas.1} parent=47 // pred_region
        %s890 = smul.u32 2, %s24
      $region60: #{moe_pallas.1} parent=47 // pred_fallthru
        _
    $region48: #{moe_pallas.1} parent=5 // pred_fallthru
      _
    %p891 = scmp.le.s32.totalorder 2, %s13
    // Predicated region
    $region61: #{moe_pallas.1} parent=5 // pred_check
      %p892 = pneg %p891
    $region62: #{moe_pallas.1} parent=5 // pred_check_branch
      %894 = sbr.rel (%p892) target = $region64
    $region63: #{moe_pallas.1} parent=5 // pred_region
      %s895 = ssub.s32 %s13, 2
      // Predicated region
      $region65: #{moe_pallas.1} parent=63 // pred_check
        %p896 = pneg %p257
      $region66: #{moe_pallas.1} parent=63 // pred_check_branch
        %898 = sbr.rel (%p896) target = $region68
      $region67: #{moe_pallas.1} parent=63 // pred_region
        %s899 = smul.u32 2, %s27
        %p900 = scmp.lt.s32.totalorder %s26, 3
        %s901 = scalar_select %p900, %s26, 3
        %p902 = scmp.lt.s32.totalorder %s899, 1
        %s903 = scalar_select %p902, %s899, 1
        %s904 = smul.addr %s901, 2
        %s905 = sadd.s32 %s903, %s904
        %s906 = smul.addr %s905, 4
        %s907 = scalar_lea.vmem %s7, %s906
      $region68: #{moe_pallas.1} parent=63 // pred_fallthru
        _
    $region64: #{moe_pallas.1} parent=5 // pred_fallthru
      _
  $region6: #{moe_pallas.1} parent=0 // loop_footer
    %s17 = sadd.s32 1, %s13
  $region7: #{moe_pallas.1} parent=0 // loop_footer_branch
    %12 = sbr.rel target = $region3
  $region8: #{moe_pallas.1} parent=0 // loop_exit
    _

</llo_original>
